<compile_context>
chip_gen: v5e
topology: v5e:2x2
jax: 0.10.0
libtpu: 0.0.40
codegen_flags: <defaults>
</compile_context>

<pallas_src>
import jax
import jax.numpy as jnp
from jax.experimental import pallas as pl
from jax.experimental.pallas import tpu as pltpu


def _round_up(x, m):
    return ((x + m - 1) // m) * m


# ----------------------------- kernels --------------------------------------


def _fusion_kernel_full(h_ref, conv_ref, w_ref, b_ref, out_ref, fused_ref):
    # h_ref:    (P, tile_n, D)   slab of all metapaths for tile_n nodes
    # conv_ref: (P, D)           per-metapath, per-feature weights (f32)
    # w_ref:    (D, O)           linear weight, already transposed (f32)
    # b_ref:    (1, O)           linear bias (f32)
    # out_ref:  (tile_n, O)
    # fused_ref:(tile_n, D)
    P = h_ref.shape[0]
    c = conv_ref[...]                                   # loaded once

    # Unrolled accumulate over metapaths (no (P, tile_n, D) temporary).
    # bf16 h promotes to f32 here because c is f32.
    fused = h_ref[0] * c[0][None, :]
    for p in range(1, P):
        fused = fused + h_ref[p] * c[p][None, :]

    fused_ref[...] = fused.astype(fused_ref.dtype)
    out_ref[...] = (
        jnp.dot(fused, w_ref[...], preferred_element_type=jnp.float32)
        + b_ref[...]
    ).astype(out_ref.dtype)


def _fusion_kernel_out_only(h_ref, conv_ref, w_ref, b_ref, out_ref):
    P = h_ref.shape[0]
    c = conv_ref[...]
    fused = h_ref[0] * c[0][None, :]
    for p in range(1, P):
        fused = fused + h_ref[p] * c[p][None, :]
    out_ref[...] = (
        jnp.dot(fused, w_ref[...], preferred_element_type=jnp.float32)
        + b_ref[...]
    ).astype(out_ref.dtype)


# ----------------------------- wrapper ---------------------------------------


def metapath_fusion(h_stacked, conv, weight, bias, *, tile_n=None, return_fused=True):
    """h_stacked: (P, N, D) f32 or bf16; conv: (P, D); weight: (out_dim, D); bias: (out_dim,)."""
    P, N, D = h_stacked.shape
    out_dim = weight.shape[0]

    # Tiny parameter tensors: prepare in the wrapper (cheap).  The big h tensor
    # is passed straight through (no pad / astype copy -- it dominates HBM traffic).
    conv_p = conv.astype(jnp.float32)                   # (P, D)
    w_p = weight.astype(jnp.float32).T                  # (D, out_dim)
    b_p = bias.astype(jnp.float32).reshape(1, out_dim)  # (1, out_dim)

    h_item = jnp.dtype(h_stacked.dtype).itemsize

    # ---- generation-aware VMEM budgeting ------------------------------------
    try:
        vmem_cap = int(pltpu.get_tpu_info().vmem_capacity_bytes)
    except Exception:
        vmem_cap = 64 * 1024 * 1024                     # conservative fallback
    small_vmem = vmem_cap < 96 * 1024 * 1024            # v7x-class: 64 MiB / TC
    budget = (26 if small_vmem else 56) * 1024 * 1024   # tile-selection budget
    vmem_ceiling = (48 if small_vmem else 96) * 1024 * 1024

    # ---- tile_n selection ----------------------------------------------------
    if tile_n is None:
        # Double-buffered per-row VMEM footprint: h slab + fused out + linear out.
        fused_rows = D * 4 if return_fused else 0
        bytes_per_row = 2 * (P * D * h_item + fused_rows + out_dim * 4)
        max_rows = max(8, budget // max(1, bytes_per_row))
        tile_n = min(1024, (max_rows // 8) * 8)          # plateau ~512-1024 rows
        tile_n = min(tile_n, _round_up(N, 8))            # never exceed the node count
        if small_vmem and N >= 32:
            # Two TensorCores: keep >= 4 grid steps so both cores double-buffer.
            tile_n = min(tile_n, _round_up(pl.cdiv(N, 4), 8))
        tile_n = max(8, tile_n)
    tile_n = max(8, _round_up(tile_n, 8))

    grid = (pl.cdiv(N, tile_n),)

    # ---- specs (all last dims are the true/full dims -> lane-legal, no padding)
    h_spec = pl.BlockSpec((P, tile_n, D), lambda i: (0, i, 0))
    conv_spec = pl.BlockSpec((P, D), lambda i: (0, 0))
    w_spec = pl.BlockSpec((D, out_dim), lambda i: (0, 0))
    b_spec = pl.BlockSpec((1, out_dim), lambda i: (0, 0))
    out_spec = pl.BlockSpec((tile_n, out_dim), lambda i: (i, 0))
    fused_spec = pl.BlockSpec((tile_n, D), lambda i: (i, 0))

    # ---- explicit VMEM limit sized from the double-buffered footprint --------
    tile_bytes = 2 * (
        P * tile_n * D * h_item
        + (tile_n * D * 4 if return_fused else 0)
        + tile_n * out_dim * 4
    )
    param_bytes = 2 * (P * D + D * out_dim + out_dim) * 4
    vmem_limit = min(
        vmem_ceiling,
        max(32 * 1024 * 1024, int((tile_bytes + param_bytes) * 1.3) + (1 << 20)),
    )

    # ---- cost estimate (bandwidth-bound custom call hint for XLA) ------------
    flops = 2 * P * N * D + 2 * N * D * out_dim
    bytes_accessed = (
        P * N * D * h_item
        + (N * D * 4 if return_fused else 0)
        + N * out_dim * 4
        + (P * D + D * out_dim + out_dim) * 4
    )
    cost = pl.CostEstimate(flops=flops, transcendentals=0,
                           bytes_accessed=bytes_accessed)

    compiler_params = pltpu.CompilerParams(
        dimension_semantics=("parallel",),
        vmem_limit_bytes=vmem_limit,
    )

    if return_fused:
        out, fused = pl.pallas_call(
            _fusion_kernel_full,
            out_shape=(
                jax.ShapeDtypeStruct((N, out_dim), jnp.float32),
                jax.ShapeDtypeStruct((N, D), jnp.float32),
            ),
            grid_spec=pltpu.PrefetchScalarGridSpec(
                num_scalar_prefetch=0,
                grid=grid,
                in_specs=[h_spec, conv_spec, w_spec, b_spec],
                out_specs=[out_spec, fused_spec],
            ),
            compiler_params=compiler_params,
            cost_estimate=cost,
        )(h_stacked, conv_p, w_p, b_p)
        return out, fused

    out = pl.pallas_call(
        _fusion_kernel_out_only,
        out_shape=jax.ShapeDtypeStruct((N, out_dim), jnp.float32),
        grid_spec=pltpu.PrefetchScalarGridSpec(
            num_scalar_prefetch=0,
            grid=grid,
            in_specs=[h_spec, conv_spec, w_spec, b_spec],
            out_specs=out_spec,
        ),
        compiler_params=compiler_params,
        cost_estimate=cost,
    )(h_stacked, conv_p, w_p, b_p)
    return out


# ----------------------------- reference -------------------------------------


def metapath_fusion_ref(h_stacked, conv, weight, bias):
    # Pure-JAX reference mirroring the PyTorch forward.
    stacked = jnp.transpose(h_stacked, (1, 0, 2))        # (N, P, D)
    fused = jnp.sum(stacked * conv[None, :, :], axis=1)  # (N, D)
    out = fused @ weight.T + bias                         # (N, out_dim)
    return out, fused


if __name__ == "__main__":
    n_metapaths, N, in_dim, out_dim = 3, 64, 32, 16

    key = jax.random.PRNGKey(0)
    k_h, k_w, k_b = jax.random.split(key, 3)

    # h_list equivalent: (P, N, D) stacked input.
    h_stacked = jax.random.normal(k_h, (n_metapaths, N, in_dim), dtype=jnp.float32)

    # Parameters (conv initialized to 1/n_metapaths as in the PyTorch module).
    conv = jnp.full((n_metapaths, in_dim), 1.0 / n_metapaths, dtype=jnp.float32)
    weight = jax.random.normal(k_w, (out_dim, in_dim), dtype=jnp.float32) * 0.1
    bias = jax.random.normal(k_b, (out_dim,), dtype=jnp.float32) * 0.1

    out, fused = metapath_fusion(h_stacked, conv, weight, bias)
    jax.block_until_ready((out, fused))

    out_only = metapath_fusion(h_stacked, conv, weight, bias, return_fused=False)
    jax.block_until_ready(out_only)

    out_ref, fused_ref = metapath_fusion_ref(h_stacked, conv, weight, bias)
    assert out.shape == out_ref.shape and fused.shape == fused_ref.shape
    assert jnp.allclose(out, out_ref, atol=1e-5, rtol=1e-5)
    assert jnp.allclose(fused, fused_ref, atol=1e-5, rtol=1e-5)
    assert jnp.allclose(out_only, out_ref, atol=1e-5, rtol=1e-5)

    print("KERNEL_OK")
</pallas_src>

<mosaic_0001>
module attributes {stable_mosaic.version = 11 : i64} {
  func.func @_fusion_kernel_full(%arg0: i32, %arg1: memref<3x16x32xf32, #tpu.memory_space<vmem>>, %arg2: memref<3x32xf32, #tpu.memory_space<vmem>>, %arg3: memref<32x16xf32, #tpu.memory_space<vmem>>, %arg4: memref<1x16xf32, #tpu.memory_space<vmem>>, %arg5: memref<16x16xf32, #tpu.memory_space<vmem>>, %arg6: memref<16x32xf32, #tpu.memory_space<vmem>>) attributes {dimension_semantics = [#tpu.dimension_semantics<parallel>], iteration_bounds = array<i64: 4>, scalar_prefetch = 0 : i64, scratch_operands = 0 : i64, tpu.core_type = #tpu.core_type<tc>, window_params = [{transform_indices = @transform_0, window_bounds = array<i64: 3, 16, 32>}, {pipeline_mode = #tpu.pipeline_mode<synchronous>, transform_indices = @transform_1, window_bounds = array<i64: 3, 32>}, {pipeline_mode = #tpu.pipeline_mode<synchronous>, transform_indices = @transform_2, window_bounds = array<i64: 32, 16>}, {pipeline_mode = #tpu.pipeline_mode<synchronous>, transform_indices = @transform_3, window_bounds = array<i64: 1, 16>}, {transform_indices = @transform_4, window_bounds = array<i64: 16, 16>}, {transform_indices = @transform_5, window_bounds = array<i64: 16, 32>}]} {
    %c0 = arith.constant 0 : index
    %c0_0 = arith.constant 0 : index
    %0 = vector.load %arg2[%c0, %c0_0] : memref<3x32xf32, #tpu.memory_space<vmem>>, vector<3x32xf32>
    %c0_1 = arith.constant 0 : index
    %c0_2 = arith.constant 0 : index
    %c0_3 = arith.constant 0 : index
    %1 = vector.load %arg1[%c0_1, %c0_2, %c0_3] : memref<3x16x32xf32, #tpu.memory_space<vmem>>, vector<1x16x32xf32>
    %2 = vector.shape_cast %1 : vector<1x16x32xf32> to vector<16x32xf32>
    %3 = vector.extract_strided_slice %0 {offsets = [0, 0], sizes = [1, 32], strides = [1, 1]} : vector<3x32xf32> to vector<1x32xf32>
    %4 = vector.shape_cast %3 : vector<1x32xf32> to vector<32xf32>
    %5 = vector.shape_cast %4 : vector<32xf32> to vector<1x32xf32>
    %6 = vector.broadcast %5 : vector<1x32xf32> to vector<16x32xf32>
    %7 = arith.mulf %2, %6 : vector<16x32xf32>
    %c1 = arith.constant 1 : index
    %c0_4 = arith.constant 0 : index
    %c0_5 = arith.constant 0 : index
    %8 = vector.load %arg1[%c1, %c0_4, %c0_5] : memref<3x16x32xf32, #tpu.memory_space<vmem>>, vector<1x16x32xf32>
    %9 = vector.shape_cast %8 : vector<1x16x32xf32> to vector<16x32xf32>
    %10 = vector.extract_strided_slice %0 {offsets = [1, 0], sizes = [1, 32], strides = [1, 1]} : vector<3x32xf32> to vector<1x32xf32>
    %11 = vector.shape_cast %10 : vector<1x32xf32> to vector<32xf32>
    %12 = vector.shape_cast %11 : vector<32xf32> to vector<1x32xf32>
    %13 = vector.broadcast %12 : vector<1x32xf32> to vector<16x32xf32>
    %14 = arith.mulf %9, %13 : vector<16x32xf32>
    %15 = arith.addf %7, %14 : vector<16x32xf32>
    %c2 = arith.constant 2 : index
    %c0_6 = arith.constant 0 : index
    %c0_7 = arith.constant 0 : index
    %16 = vector.load %arg1[%c2, %c0_6, %c0_7] : memref<3x16x32xf32, #tpu.memory_space<vmem>>, vector<1x16x32xf32>
    %17 = vector.shape_cast %16 : vector<1x16x32xf32> to vector<16x32xf32>
    %18 = vector.extract_strided_slice %0 {offsets = [2, 0], sizes = [1, 32], strides = [1, 1]} : vector<3x32xf32> to vector<1x32xf32>
    %19 = vector.shape_cast %18 : vector<1x32xf32> to vector<32xf32>
    %20 = vector.shape_cast %19 : vector<32xf32> to vector<1x32xf32>
    %21 = vector.broadcast %20 : vector<1x32xf32> to vector<16x32xf32>
    %22 = arith.mulf %17, %21 : vector<16x32xf32>
    %23 = arith.addf %15, %22 : vector<16x32xf32>
    %c0_8 = arith.constant 0 : index
    %c0_9 = arith.constant 0 : index
    %24 = vector.load %arg6[%c0_8, %c0_9] : memref<16x32xf32, #tpu.memory_space<vmem>>, vector<16x32xf32>
    tpu.vector_store %arg6[%c0_8, %c0_9], %23 {strides = array<i32>} : memref<16x32xf32, #tpu.memory_space<vmem>>, vector<16x32xf32>,
    %c0_10 = arith.constant 0 : index
    %c0_11 = arith.constant 0 : index
    %25 = vector.load %arg3[%c0_10, %c0_11] : memref<32x16xf32, #tpu.memory_space<vmem>>, vector<32x16xf32>
    %cst = arith.constant dense<0.000000e+00> : vector<16x16xf32>
    %26 = tpu.matmul %23, %25, %cst {dimension_numbers = #tpu.dot_dimension_numbers<[1], [0], [0], [1], [0, 0, 1, 1], [], []>} : vector<16x32xf32>, vector<32x16xf32>, vector<16x16xf32> -> vector<16x16xf32>
    %c0_12 = arith.constant 0 : index
    %c0_13 = arith.constant 0 : index
    %27 = vector.load %arg4[%c0_12, %c0_13] : memref<1x16xf32, #tpu.memory_space<vmem>>, vector<1x16xf32>
    %28 = vector.broadcast %27 : vector<1x16xf32> to vector<16x16xf32>
    %29 = arith.addf %26, %28 : vector<16x16xf32>
    %c0_14 = arith.constant 0 : index
    %c0_15 = arith.constant 0 : index
    %30 = vector.load %arg5[%c0_14, %c0_15] : memref<16x16xf32, #tpu.memory_space<vmem>>, vector<16x16xf32>
    tpu.vector_store %arg5[%c0_14, %c0_15], %29 {strides = array<i32>} : memref<16x16xf32, #tpu.memory_space<vmem>>, vector<16x16xf32>,
    return
  }
  func.func @transform_0(%arg0: i32) -> (i32, i32, i32) {
    %c0_i32 = arith.constant 0 : i32
    %c0_i32_0 = arith.constant 0 : i32
    %c0_i32_1 = arith.constant 0 : i32
    return %c0_i32, %arg0, %c0_i32_0 : i32, i32, i32
  }
  func.func @transform_1(%arg0: i32) -> (i32, i32) {
    %c0_i32 = arith.constant 0 : i32
    %c0_i32_0 = arith.constant 0 : i32
    %c0_i32_1 = arith.constant 0 : i32
    return %c0_i32, %c0_i32_0 : i32, i32
  }
  func.func @transform_2(%arg0: i32) -> (i32, i32) {
    %c0_i32 = arith.constant 0 : i32
    %c0_i32_0 = arith.constant 0 : i32
    %c0_i32_1 = arith.constant 0 : i32
    return %c0_i32, %c0_i32_0 : i32, i32
  }
  func.func @transform_3(%arg0: i32) -> (i32, i32) {
    %c0_i32 = arith.constant 0 : i32
    %c0_i32_0 = arith.constant 0 : i32
    %c0_i32_1 = arith.constant 0 : i32
    return %c0_i32, %c0_i32_0 : i32, i32
  }
  func.func @transform_4(%arg0: i32) -> (i32, i32) {
    %c0_i32 = arith.constant 0 : i32
    %c0_i32_0 = arith.constant 0 : i32
    return %arg0, %c0_i32 : i32, i32
  }
  func.func @transform_5(%arg0: i32) -> (i32, i32) {
    %c0_i32 = arith.constant 0 : i32
    %c0_i32_0 = arith.constant 0 : i32
    return %arg0, %c0_i32 : i32, i32
  }
}

</mosaic_0001>

<llo_original>
// kernel: tpu_custom_call.1
$region0: #{tpu_custom_call.1}
  #allocation0 [shape = 'u32[]', space=smem, size = 0x4, offset = 0x4, fixed_abs, tag = 'smem constant byte address 0x4 - core index']
  #allocation1 [shape = 'u32[72,128]{1,0:T(1,128)}', space=vmem, size = 0x9000, scoped, tag = 'internal scratch']
  %s0 = inlined_call_operand.vmem [shape: f32[3,64,32], index: 0, kind: input, shape index: {}]
  %s1 = inlined_call_operand.vmem [shape: f32[3,32], index: 1, kind: input, shape index: {}]
  %s2 = inlined_call_operand.vmem [shape: f32[32,16], index: 2, kind: input, shape index: {}]
  %s3 = inlined_call_operand.vmem [shape: f32[1,16], index: 3, kind: input, shape index: {}]
  %s4 = inlined_call_operand.vmem [shape: f32[64,16], index: 4, kind: output, shape index: {0}]
  %s5 = inlined_call_operand.vmem [shape: f32[64,32], index: 5, kind: output, shape index: {1}]
  %6 = xla_tuple %s4, %s5
  %s7 = sld [smem:[#allocation0]]
  $region95: #{tpu_custom_call.1} parent=0
    _
  %s9 = ssub.s32 1, %s7
  %s10 = scalar_select 0, %s9, %s7
  $region1: #{tpu_custom_call.1} parent=0
    #allocation2 [shape = 'u8[49152]{0}', space=vmem, size = 0xc000, scoped, tag = 'input window, operand 0']
    loop: start=0, step=1, limit=6
    $region2: #{tpu_custom_call.1} parent=1 // loop_pre_header
      _
    $region3: #{tpu_custom_call.1} parent=1 // loop_header
      %s12 = sphi 0, %s16
      %p13 = scmp.ge.s32.totalorder %s12, 6
      %s22 = sphi 0, %s24
      %s25 = sphi 0, %s22
      %s26 = sphi 0, %s25
      %s42 = sphi 0, %s26
      %s46 = sphi 0, %s46
      %s48 = sphi 0, %s46
      %s49 = sphi 0, %s48
      %s63 = sphi 0, %s49
      %s67 = sphi 0, %s67
      %s69 = sphi 0, %s67
      %s70 = sphi 0, %s69
      %s84 = sphi 0, %s70
      %s88 = sphi 0, %s88
      %s90 = sphi 0, %s88
      %s91 = sphi 0, %s90
      %s105 = sphi 0, %s91
      %s111 = sphi 0, %s113
      %s114 = sphi 0, %s111
      %s115 = sphi 0, %s114
      %s131 = sphi 0, %s115
      %s137 = sphi 0, %s139
      %s140 = sphi 0, %s137
      %s141 = sphi 0, %s140
      %s157 = sphi 0, %s141
    $region4: #{tpu_custom_call.1} parent=1 // loop_header_branch
      %15 = sbr.rel (%p13) target = $region8
    $region5: #{tpu_custom_call.1} parent=1 // loop_body
      %s17 = ssub.s32 %s12, 1
      %s18 = ssub.s32 %s12, 2
      %s19 = sadd.s32 %s12, 1
      %s20 = ssub.s32 %s12, %s19
      %p21 = scmp.eq.s32.totalorder %s20, 0
      %s23 = sadd.s32 %s22, 1
      %s24 = scalar_select %p21, %s22, %s23
      %p27 = pneg %p21
      %p28 = scmp.eq.s32.totalorder %s12, 3
      %p29 = por %p27, %p28
      %p30 = scmp.ne.s32.totalorder %s22, %s25
      %p31 = scmp.eq.s32.totalorder %s12, 0
      %p32 = por %p30, %p31
      %p33 = scmp.ne.s32.totalorder %s22, %s25
      %p34 = scmp.eq.s32.totalorder %s17, 3
      %p35 = por %p33, %p34
      %p36 = scmp.ne.s32.totalorder %s25, %s26
      %p37 = scmp.eq.s32.totalorder %s17, 0
      %p38 = por %p36, %p37
      %p39 = scmp.ne.s32.totalorder %s25, %s26
      %p40 = scmp.eq.s32.totalorder %s18, 3
      %p41 = por %p39, %p40
      %p43 = scmp.ne.s32.totalorder %s26, %s42
      %p44 = scmp.eq.s32.totalorder %s18, 0
      %p45 = por %p43, %p44
      %s47 = sadd.s32 %s46, 1
      %p50 = scmp.eq.s32.totalorder %s12, 3
      %p51 = scmp.ne.s32.totalorder %s46, %s48
      %p52 = scmp.eq.s32.totalorder %s12, 0
      %p53 = por %p51, %p52
      %p54 = scmp.ne.s32.totalorder %s46, %s48
      %p55 = scmp.eq.s32.totalorder %s17, 3
      %p56 = por %p54, %p55
      %p57 = scmp.ne.s32.totalorder %s48, %s49
      %p58 = scmp.eq.s32.totalorder %s17, 0
      %p59 = por %p57, %p58
      %p60 = scmp.ne.s32.totalorder %s48, %s49
      %p61 = scmp.eq.s32.totalorder %s18, 3
      %p62 = por %p60, %p61
      %p64 = scmp.ne.s32.totalorder %s49, %s63
      %p65 = scmp.eq.s32.totalorder %s18, 0
      %p66 = por %p64, %p65
      %s68 = sadd.s32 %s67, 1
      %p71 = scmp.eq.s32.totalorder %s12, 3
      %p72 = scmp.ne.s32.totalorder %s67, %s69
      %p73 = scmp.eq.s32.totalorder %s12, 0
      %p74 = por %p72, %p73
      %p75 = scmp.ne.s32.totalorder %s67, %s69
      %p76 = scmp.eq.s32.totalorder %s17, 3
      %p77 = por %p75, %p76
      %p78 = scmp.ne.s32.totalorder %s69, %s70
      %p79 = scmp.eq.s32.totalorder %s17, 0
      %p80 = por %p78, %p79
      %p81 = scmp.ne.s32.totalorder %s69, %s70
      %p82 = scmp.eq.s32.totalorder %s18, 3
      %p83 = por %p81, %p82
      %p85 = scmp.ne.s32.totalorder %s70, %s84
      %p86 = scmp.eq.s32.totalorder %s18, 0
      %p87 = por %p85, %p86
      %s89 = sadd.s32 %s88, 1
      %p92 = scmp.eq.s32.totalorder %s12, 3
      %p93 = scmp.ne.s32.totalorder %s88, %s90
      %p94 = scmp.eq.s32.totalorder %s12, 0
      %p95 = por %p93, %p94
      %p96 = scmp.ne.s32.totalorder %s88, %s90
      %p97 = scmp.eq.s32.totalorder %s17, 3
      %p98 = por %p96, %p97
      %p99 = scmp.ne.s32.totalorder %s90, %s91
      %p100 = scmp.eq.s32.totalorder %s17, 0
      %p101 = por %p99, %p100
      %p102 = scmp.ne.s32.totalorder %s90, %s91
      %p103 = scmp.eq.s32.totalorder %s18, 3
      %p104 = por %p102, %p103
      %p106 = scmp.ne.s32.totalorder %s91, %s105
      %p107 = scmp.eq.s32.totalorder %s18, 0
      %p108 = por %p106, %p107
      %s109 = ssub.s32 %s12, %s19
      %p110 = scmp.eq.s32.totalorder %s109, 0
      %s112 = sadd.s32 %s111, 1
      %s113 = scalar_select %p110, %s111, %s112
      %p116 = pneg %p110
      %p117 = scmp.eq.s32.totalorder %s12, 3
      %p118 = por %p116, %p117
      %p119 = scmp.ne.s32.totalorder %s111, %s114
      %p120 = scmp.eq.s32.totalorder %s12, 0
      %p121 = por %p119, %p120
      %p122 = scmp.ne.s32.totalorder %s111, %s114
      %p123 = scmp.eq.s32.totalorder %s17, 3
      %p124 = por %p122, %p123
      %p125 = scmp.ne.s32.totalorder %s114, %s115
      %p126 = scmp.eq.s32.totalorder %s17, 0
      %p127 = por %p125, %p126
      %p128 = scmp.ne.s32.totalorder %s114, %s115
      %p129 = scmp.eq.s32.totalorder %s18, 3
      %p130 = por %p128, %p129
      %p132 = scmp.ne.s32.totalorder %s115, %s131
      %p133 = scmp.eq.s32.totalorder %s18, 0
      %p134 = por %p132, %p133
      %s135 = ssub.s32 %s12, %s19
      %p136 = scmp.eq.s32.totalorder %s135, 0
      %s138 = sadd.s32 %s137, 1
      %s139 = scalar_select %p136, %s137, %s138
      %p142 = pneg %p136
      %p143 = scmp.eq.s32.totalorder %s12, 3
      %p144 = por %p142, %p143
      %p145 = scmp.ne.s32.totalorder %s137, %s140
      %p146 = scmp.eq.s32.totalorder %s12, 0
      %p147 = por %p145, %p146
      %p148 = scmp.ne.s32.totalorder %s137, %s140
      %p149 = scmp.eq.s32.totalorder %s17, 3
      %p150 = por %p148, %p149
      %p151 = scmp.ne.s32.totalorder %s140, %s141
      %p152 = scmp.eq.s32.totalorder %s17, 0
      %p153 = por %p151, %p152
      %p154 = scmp.ne.s32.totalorder %s140, %s141
      %p155 = scmp.eq.s32.totalorder %s18, 3
      %p156 = por %p154, %p155
      %p158 = scmp.ne.s32.totalorder %s141, %s157
      %p159 = scmp.eq.s32.totalorder %s18, 0
      %p160 = por %p158, %p159
      %p161 = scmp.le.s32.totalorder 1, %s12
      %p162 = scmp.lt.s32.totalorder %s12, 5
      %p163 = pnand %p161, %p162
      %p164 = pneg %p163
      // Predicated region
      $region9: #{tpu_custom_call.1} parent=5 // pred_check
        _
      $region10: #{tpu_custom_call.1} parent=5 // pred_check_branch
        %166 = sbr.rel (%p163) target = $region12
      $region11: #{tpu_custom_call.1} parent=5 // pred_region
        %s167 = ssub.s32 %s12, 1
        // Predicated region
        $region13: #{tpu_custom_call.1} parent=11 // pred_check
          %p168 = pneg %p59
        $region14: #{tpu_custom_call.1} parent=11 // pred_check_branch
          %170 = sbr.rel (%p168) target = $region16
        $region15: #{tpu_custom_call.1} parent=11 // pred_region
          _
        $region16: #{tpu_custom_call.1} parent=11 // pred_fallthru
          _
        // Predicated region
        $region17: #{tpu_custom_call.1} parent=11 // pred_check
          %p171 = pneg %p80
        $region18: #{tpu_custom_call.1} parent=11 // pred_check_branch
          %173 = sbr.rel (%p171) target = $region20
        $region19: #{tpu_custom_call.1} parent=11 // pred_region
          _
        $region20: #{tpu_custom_call.1} parent=11 // pred_fallthru
          _
        // Predicated region
        $region21: #{tpu_custom_call.1} parent=11 // pred_check
          %p174 = pneg %p101
        $region22: #{tpu_custom_call.1} parent=11 // pred_check_branch
          %176 = sbr.rel (%p174) target = $region24
        $region23: #{tpu_custom_call.1} parent=11 // pred_region
          _
        $region24: #{tpu_custom_call.1} parent=11 // pred_fallthru
          _
      $region12: #{tpu_custom_call.1} parent=5 // pred_fallthru
        _
      %p177 = scmp.lt.s32.totalorder %s12, 4
      // Predicated region
      $region25: #{tpu_custom_call.1} parent=5 // pred_check
        %p178 = pneg %p177
      $region26: #{tpu_custom_call.1} parent=5 // pred_check_branch
        %180 = sbr.rel (%p178) target = $region28
      $region27: #{tpu_custom_call.1} parent=5 // pred_region
        // Predicated region
        $region29: #{tpu_custom_call.1} parent=27 // pred_check
          %p181 = pneg %p32
        $region30: #{tpu_custom_call.1} parent=27 // pred_check_branch
          %183 = sbr.rel (%p181) target = $region32
        $region31: #{tpu_custom_call.1} parent=27 // pred_region
          %s184 = sand.u32 %s22, 1
          %s185 = sand.u32 %s22, 1
          %s186 = smul.addr %s185, 48
          %s187 = scalar_lea.vmem [#allocation2], %s186
          %s188 = smul.u32 2, %s12
          %s189 = smul.addr %s188, 8
          %s190 = scalar_lea.vmem %s0, %s189
          // Predicated region
          $region33: #{tpu_custom_call.1} parent=31 // pred_check
            _
          $region34: #{tpu_custom_call.1} parent=31 // pred_check_branch
            %192 = sbr.rel (0) target = $region36
          $region35: #{tpu_custom_call.1} parent=31 // pred_region
            // Predicated region
            $region37: #{tpu_custom_call.1} parent=35 // pred_check
              _
            $region38: #{tpu_custom_call.1} parent=35 // pred_check_branch
              %194 = sbr.rel (0) target = $region40
            $region39: #{tpu_custom_call.1} parent=35 // pred_region
              // Predicated region
              $region52: #{tpu_custom_call.1} parent=39 // pred_check
                _
              $region53: #{tpu_custom_call.1} parent=39 // pred_check_branch
                %220 = sbr.rel (0) target = $region55
              $region54: #{tpu_custom_call.1} parent=39 // pred_region
                loop: start=0, step=1, limit=1
                $region56: #{tpu_custom_call.1} parent=54 // loop_pre_header
                  _
                $region57: #{tpu_custom_call.1} parent=54 // loop_header
                  %s222 = sphi 0, %s226
                  %p223 = scmp.ge.s32.totalorder %s222, 1
                  %s227 = sphi %s190, %s190
                  %s228 = sphi %s187, %s187
                $region58: #{tpu_custom_call.1} parent=54 // loop_header_branch
                  %225 = sbr.rel (%p223) target = $region62
                $region59: #{tpu_custom_call.1} parent=54 // loop_body
                  %v229 = vld [vmem:[%s227] sm:$0xff]
                  %230 = vst [vmem:[%s228] sm:$0xff] %v229
                  %v231 = vld [vmem:[%s227 + $0x8] sm:$0xff]
                  %232 = vst [vmem:[%s228 + $0x8] sm:$0xff] %v231
                  %v233 = vld [vmem:[%s227 + $0x40] sm:$0xff]
                  %234 = vst [vmem:[%s228 + $0x10] sm:$0xff] %v233
                  %v235 = vld [vmem:[%s227 + $0x48] sm:$0xff]
                  %236 = vst [vmem:[%s228 + $0x18] sm:$0xff] %v235
                  %v237 = vld [vmem:[%s227 + $0x80] sm:$0xff]
                  %238 = vst [vmem:[%s228 + $0x20] sm:$0xff] %v237
                  %v239 = vld [vmem:[%s227 + $0x88] sm:$0xff]
                  %240 = vst [vmem:[%s228 + $0x28] sm:$0xff] %v239
                $region60: #{tpu_custom_call.1} parent=54 // loop_footer
                  %s226 = sadd.s32 1, %s222
                $region61: #{tpu_custom_call.1} parent=54 // loop_footer_branch
                  %221 = sbr.rel target = $region57
                $region62: #{tpu_custom_call.1} parent=54 // loop_exit
                  _
              $region55: #{tpu_custom_call.1} parent=39 // pred_fallthru
                _
              // Predicated region
              $region63: #{tpu_custom_call.1} parent=39 // pred_check
                _
              $region64: #{tpu_custom_call.1} parent=39 // pred_check_branch
                %242 = sbr.rel target = $region66
              $region65: #{tpu_custom_call.1} parent=39 // pred_region
                _
              $region66: #{tpu_custom_call.1} parent=39 // pred_fallthru
                _
            $region40: #{tpu_custom_call.1} parent=35 // pred_fallthru
              _
            // Predicated region
            $region41: #{tpu_custom_call.1} parent=35 // pred_check
              _
            $region42: #{tpu_custom_call.1} parent=35 // pred_check_branch
              %196 = sbr.rel target = $region44
            $region43: #{tpu_custom_call.1} parent=35 // pred_region
              %s198 = ssub.s32 256, 1
              loop: start=0, step=1, limit=1
              $region45: #{tpu_custom_call.1} parent=43 // loop_pre_header
                _
              $region46: #{tpu_custom_call.1} parent=43 // loop_header
                %s200 = sphi 0, %s204
                %p201 = scmp.ge.s32.totalorder %s200, 1
                %s205 = sphi %s190, %s190
                %s206 = sphi %s187, %s187
              $region47: #{tpu_custom_call.1} parent=43 // loop_header_branch
                %203 = sbr.rel (%p201) target = $region51
              $region48: #{tpu_custom_call.1} parent=43 // loop_body
                %v207 = vld [vmem:[%s205] sm:%s198]
                %208 = vst [vmem:[%s206] sm:%s198] %v207
                %v209 = vld [vmem:[%s205 + $0x8] sm:%s198]
                %210 = vst [vmem:[%s206 + $0x8] sm:%s198] %v209
                %v211 = vld [vmem:[%s205 + $0x40] sm:%s198]
                %212 = vst [vmem:[%s206 + $0x10] sm:%s198] %v211
                %v213 = vld [vmem:[%s205 + $0x48] sm:%s198]
                %214 = vst [vmem:[%s206 + $0x18] sm:%s198] %v213
                %v215 = vld [vmem:[%s205 + $0x80] sm:%s198]
                %216 = vst [vmem:[%s206 + $0x20] sm:%s198] %v215
                %v217 = vld [vmem:[%s205 + $0x88] sm:%s198]
                %218 = vst [vmem:[%s206 + $0x28] sm:%s198] %v217
              $region49: #{tpu_custom_call.1} parent=43 // loop_footer
                %s204 = sadd.s32 1, %s200
              $region50: #{tpu_custom_call.1} parent=43 // loop_footer_branch
                %199 = sbr.rel target = $region46
              $region51: #{tpu_custom_call.1} parent=43 // loop_exit
                _
            $region44: #{tpu_custom_call.1} parent=35 // pred_fallthru
              _
          $region36: #{tpu_custom_call.1} parent=31 // pred_fallthru
            _
          %243 = vnop
        $region32: #{tpu_custom_call.1} parent=27 // pred_fallthru
          _
      $region28: #{tpu_custom_call.1} parent=5 // pred_fallthru
        _
      %p244 = scmp.le.s32.totalorder 1, %s12
      %p245 = scmp.lt.s32.totalorder %s12, 5
      %p246 = pnand %p244, %p245
      %p247 = pneg %p246
      // Predicated region
      $region67: #{tpu_custom_call.1} parent=5 // pred_check
        _
      $region68: #{tpu_custom_call.1} parent=5 // pred_check_branch
        %249 = sbr.rel (%p246) target = $region70
      $region69: #{tpu_custom_call.1} parent=5 // pred_region
        %s250 = ssub.s32 %s12, 1
        %s251 = sand.u32 %s25, 1
        %s252 = sand.u32 %s25, 1
        %s253 = smul.addr %s252, 48
        %s254 = scalar_lea.vmem [#allocation2], %s253
        // Predicated region
        $region71: #{tpu_custom_call.1} parent=69 // pred_check
          %p255 = pneg %p38
        $region72: #{tpu_custom_call.1} parent=69 // pred_check_branch
          %257 = sbr.rel (%p255) target = $region74
        $region73: #{tpu_custom_call.1} parent=69 // pred_region
          _
        $region74: #{tpu_custom_call.1} parent=69 // pred_fallthru
          _
        %s258 = sand.u32 %s25, 1
        %s259 = sand.u32 %s25, 1
        %s260 = smul.addr %s259, 48
        %s261 = scalar_lea.vmem [#allocation2], %s260
        %p262 = pneg %p38
        %p263 = pneg %p35
        %p264 = pneg %p59
        %p265 = pneg %p56
        %p266 = pneg %p80
        %p267 = pneg %p77
        %p268 = pneg %p101
        %p269 = pneg %p98
        %p270 = pneg %p127
        %p271 = pneg %p124
        %s272 = smul.u32 2, %s17
        %p273 = scmp.lt.s32.totalorder %s272, 7
        %s274 = scalar_select %p273, %s272, 7
        %s275 = smul.addr %s274, 8
        %s276 = scalar_lea.vmem %s4, %s275
        %p277 = pneg %p153
        %p278 = pneg %p150
        %s279 = smul.u32 2, %s17
        %p280 = scmp.lt.s32.totalorder %s279, 7
        %s281 = scalar_select %p280, %s279, 7
        %s282 = smul.addr %s281, 8
        %s283 = scalar_lea.vmem %s5, %s282
        %s284 = smul.u32 2, %s17
        %s285 = smul.u32 2, %s17
        %p286 = scmp.lt.s32.totalorder %s285, 7
        %s287 = scalar_select %p286, %s285, 7
        %s288 = smul.addr %s287, 8
        %s289 = scalar_lea.vmem %s4, %s288
        %s290 = smul.u32 2, %s17
        %s291 = smul.u32 2, %s17
        %p292 = scmp.lt.s32.totalorder %s291, 7
        %s293 = scalar_select %p292, %s291, 7
        %s294 = smul.addr %s293, 8
        %s295 = scalar_lea.vmem %s5, %s294
        %s296 = smul.u32 2, %s17
        %v297 = vld [vmem:[%s1] sm:$0x7]
        %v298 = vld [vmem:[%s254] sm:$0xff]
        %v299 = vld [vmem:[%s254 + $0x8] sm:$0xff]
        %v300 = vperm.slane %v297, 0
        %v301 = vmul.f32 %v298, %v300
        %v302 = vmul.f32 %v299, %v300
        %s303 = scalar_lea.vmem %s254, 16 [#allocation2]
        %v304 = vld [vmem:[%s303] sm:$0xff]
        %v305 = vld [vmem:[%s303 + $0x8] sm:$0xff]
        %v306 = vperm.slane %v297, 1
        %v307 = vmul.f32 %v304, %v306
        %v308 = vmul.f32 %v305, %v306
        %v309 = vadd.f32 %v301, %v307
        %v310 = vadd.f32 %v302, %v308
        %s311 = scalar_lea.vmem %s254, 32 [#allocation2]
        %v312 = vld [vmem:[%s311] sm:$0xff]
        %v313 = vld [vmem:[%s311 + $0x8] sm:$0xff]
        %v314 = vperm.slane %v297, 2
        %v315 = vmul.f32 %v312, %v314
        %v316 = vmul.f32 %v313, %v314
        %v317 = vadd.f32 %v309, %v315
        %v318 = vadd.f32 %v310, %v316
        %vm319 = vcmask 261120
        %320 = vst.msk [vmem:[%s295] sm:$0xff] %vm319, %v317
        %321 = vst.msk [vmem:[%s295 + $0x8] sm:$0xff] %vm319, %v318
        %v322 = vld [vmem:[%s2] sm:$0xff]
        %v323 = vld [vmem:[%s2 + $0x8] sm:$0xff]
        %v324 = vld [vmem:[%s2 + $0x10] sm:$0xff]
        %v325 = vld [vmem:[%s2 + $0x18] sm:$0xff]
        %v326 = vld [vmem:[%s3] sm:$0x1]
        %v328 = vperm.slane %v326, 0
        %v331 = vsel %vm319, %v317, 0
        %v334 = vsel %vm319, %v318, 0
        %336 = vmatpush.msra.mxu0 0.0
        %337 = vmatpush.msra.mxu0 0.0
        %338 = vmatpush.msra.mxu0 0.0
        %339 = vmatpush.msra.mxu0 0.0
        %340 = vmatpush.msra.mxu0 0.0
        %341 = vmatpush.msra.mxu0 0.0
        %342 = vmatpush.msra.mxu0 0.0
        %343 = vmatpush.msra.mxu0 0.0
        %344 = vmatpush.msra.mxu0 0.0
        %345 = vmatpush.msra.mxu0 0.0
        %346 = vmatpush.msra.mxu0 0.0
        %347 = vmatpush.msra.mxu0 0.0
        %348 = vmatpush.msra.mxu0 %v325
        %349 = vmatpush.msra.mxu0 %v324
        %350 = vmatpush.msra.mxu0 %v323
        %351 = vmatpush.msra.mxu0 %v322
        %352 = vmatmul.f32.gmra.mxu0 %v331
        %v353 = vpop.f32.mrf.mxu0
        %v354 = vadd.f32 %v328, %v353
        %355 = vmatmul.f32.gmra.mxu0 %v334
        %v356 = vpop.f32.mrf.mxu0
        %v357 = vadd.f32 %v328, %v356
        %358 = vdwg.mxu0
        %vm359 = vcmask 130048
        %360 = vst.msk [vmem:[%s289] sm:$0xff] %vm359, %v354
        %361 = vst.msk [vmem:[%s289 + $0x8] sm:$0xff] %vm359, %v357
        %s362 = smul.u32 2, %s17
        %p363 = scmp.lt.s32.totalorder %s362, 7
        %s364 = scalar_select %p363, %s362, 7
        %s365 = smul.addr %s364, 8
        %s366 = scalar_lea.vmem %s4, %s365
        %s367 = smul.u32 2, %s17
        %p368 = scmp.lt.s32.totalorder %s367, 7
        %s369 = scalar_select %p368, %s367, 7
        %s370 = smul.addr %s369, 8
        %s371 = scalar_lea.vmem %s5, %s370
        // Predicated region
        $region75: #{tpu_custom_call.1} parent=69 // pred_check
          %p372 = pneg %p124
        $region76: #{tpu_custom_call.1} parent=69 // pred_check_branch
          %374 = sbr.rel (%p372) target = $region78
        $region77: #{tpu_custom_call.1} parent=69 // pred_region
          %s375 = smul.u32 2, %s17
        $region78: #{tpu_custom_call.1} parent=69 // pred_fallthru
          _
        // Predicated region
        $region79: #{tpu_custom_call.1} parent=69 // pred_check
          %p376 = pneg %p150
        $region80: #{tpu_custom_call.1} parent=69 // pred_check_branch
          %378 = sbr.rel (%p376) target = $region82
        $region81: #{tpu_custom_call.1} parent=69 // pred_region
          %s379 = smul.u32 2, %s17
        $region82: #{tpu_custom_call.1} parent=69 // pred_fallthru
          _
      $region70: #{tpu_custom_call.1} parent=5 // pred_fallthru
        _
      %p380 = scmp.le.s32.totalorder 2, %s12
      // Predicated region
      $region83: #{tpu_custom_call.1} parent=5 // pred_check
        %p381 = pneg %p380
      $region84: #{tpu_custom_call.1} parent=5 // pred_check_branch
        %383 = sbr.rel (%p381) target = $region86
      $region85: #{tpu_custom_call.1} parent=5 // pred_region
        %s384 = ssub.s32 %s12, 2
        // Predicated region
        $region87: #{tpu_custom_call.1} parent=85 // pred_check
          %p385 = pneg %p130
        $region88: #{tpu_custom_call.1} parent=85 // pred_check_branch
          %387 = sbr.rel (%p385) target = $region90
        $region89: #{tpu_custom_call.1} parent=85 // pred_region
          %s388 = smul.u32 2, %s18
          %p389 = scmp.lt.s32.totalorder %s388, 7
          %s390 = scalar_select %p389, %s388, 7
          %s391 = smul.addr %s390, 8
          %s392 = scalar_lea.vmem %s4, %s391
        $region90: #{tpu_custom_call.1} parent=85 // pred_fallthru
          _
        // Predicated region
        $region91: #{tpu_custom_call.1} parent=85 // pred_check
          %p393 = pneg %p156
        $region92: #{tpu_custom_call.1} parent=85 // pred_check_branch
          %395 = sbr.rel (%p393) target = $region94
        $region93: #{tpu_custom_call.1} parent=85 // pred_region
          %s396 = smul.u32 2, %s18
          %p397 = scmp.lt.s32.totalorder %s396, 7
          %s398 = scalar_select %p397, %s396, 7
          %s399 = smul.addr %s398, 8
          %s400 = scalar_lea.vmem %s5, %s399
        $region94: #{tpu_custom_call.1} parent=85 // pred_fallthru
          _
      $region86: #{tpu_custom_call.1} parent=5 // pred_fallthru
        _
    $region6: #{tpu_custom_call.1} parent=1 // loop_footer
      %s16 = sadd.s32 1, %s12
    $region7: #{tpu_custom_call.1} parent=1 // loop_footer_branch
      %11 = sbr.rel target = $region3
    $region8: #{tpu_custom_call.1} parent=1 // loop_exit
      _

</llo_original>
